<compile_context>
chip_gen: v5e
topology: v5e:2x2
jax: 0.10.0
libtpu: 0.0.40
codegen_flags: <defaults>
</compile_context>

<pallas_src>
import math
import functools

import jax
import jax.numpy as jnp
from jax.experimental import pallas as pl
from jax.experimental.pallas import tpu as pltpu


def make_pe_table(seq_len: int, d_model: int) -> jnp.ndarray:
    """(seq_len, d_model) sinusoidal table, identical to the PyTorch __init__."""
    position = jnp.arange(seq_len, dtype=jnp.float32)[:, None]             # (S, 1)
    div_term = jnp.exp(
        jnp.arange(0, d_model, 2, dtype=jnp.float32) * (-math.log(10000.0) / d_model)
    )                                                                       # (D/2,)
    angles = position * div_term                                            # (S, D/2)
    pe = jnp.zeros((seq_len, d_model), dtype=jnp.float32)
    pe = pe.at[:, 0::2].set(jnp.sin(angles))
    pe = pe.at[:, 1::2].set(jnp.cos(angles))
    return pe


def _pos_enc_kernel(seed_ref, x_ref, pe_ref, o_ref, *, dropout_p: float, training: bool):
    # x_ref / o_ref: (B, ts, D) blocks; pe_ref: (ts, D) block.
    y = x_ref[...] + pe_ref[...][None, :, :]     # broadcast pe over the batch dim

    if training and dropout_p > 0.0:
        # Inverted dropout (nn.Dropout train-mode semantics).
        # Reseed per grid step from (user seed, tile index): order-independent,
        # no cross-tile stream collisions -> "parallel" grid axis is safe.
        pltpu.prng_seed(seed_ref[0], pl.program_id(0))
        bits = pltpu.prng_random_bits(y.shape)
        threshold = int(dropout_p * float(1 << 24))   # uniform[0,1) >= p, int domain
        keep = (bits & 0xFFFFFF) >= threshold
        scale = 1.0 / (1.0 - dropout_p)
        y = jnp.where(keep, y * scale, 0.0)

    o_ref[...] = y.astype(o_ref.dtype)


def _sublane_tile(dtype) -> int:
    return {4: 8, 2: 16, 1: 32}.get(jnp.dtype(dtype).itemsize, 8)


def _pick_seq_tile(B: int, S: int, D: int, dtype, budget_bytes: int = 4 << 20) -> int:
    """Seq-tile length: multiple of the native sublane tile, padded block <= budget,
    and small enough that the grid has >= 2 steps when S allows it."""
    sub = _sublane_tile(dtype)
    if S <= sub:
        return S                                   # single full-extent block along S
    itemsize = jnp.dtype(dtype).itemsize
    lane_d = pl.cdiv(D, 128) * 128                 # lane padding counts toward VMEM
    bytes_per_seq_row = B * lane_d * itemsize
    max_rows = max(sub, (budget_bytes // bytes_per_seq_row) // sub * sub)
    # Cap at ~half of S (rounded up to a sublane multiple) so both v7x
    # TensorCores get at least one tile each.
    half_rows = pl.cdiv(pl.cdiv(S, 2), sub) * sub
    ts = min(max_rows, half_rows, pl.cdiv(S, sub) * sub)
    return max(sub, ts)


def _vmem_limit_bytes(B: int, D: int, ts: int, dtype) -> int:
    """Padded, double-buffered working set (2x in + 2x out + 2x pe) + headroom."""
    itemsize = jnp.dtype(dtype).itemsize
    sub = _sublane_tile(dtype)
    lane_d = pl.cdiv(D, 128) * 128
    ts_pad = pl.cdiv(ts, sub) * sub
    x_blk = B * ts_pad * lane_d * itemsize
    pe_blk = ts_pad * lane_d * itemsize
    working = 2 * (x_blk + x_blk + pe_blk)
    # >= 16 MiB so we never regress below common defaults; <= 48 MiB so the
    # limit stays under v7x's 64 MiB physical VMEM per TensorCore.
    return int(min(max(working + (4 << 20), 16 << 20), 48 << 20))


def positional_encoding_forward(x, pe, *, dropout_p: float = 0.0,
                                training: bool = False, seed: int = 0,
                                donate_x: bool = False,
                                allow_xla_fast_path: bool = False):
    """x: (B, S, D); pe: (S_max, D) with S <= S_max. Returns dropout(x + pe[:S])."""
    B, S, D = x.shape
    pe2 = pe[:S, :].astype(x.dtype)                # matches self.pe[:, :S, :], in x.dtype

    if allow_xla_fast_path and (not training or dropout_p == 0.0):
        # Eval-mode add fuses at HBM roofline in plain XLA; skip the kernel launch.
        return x + pe2[None, :, :]

    ts = _pick_seq_tile(B, S, D, x.dtype)
    n_tiles = pl.cdiv(S, ts)                       # ragged last tile handled by Pallas
    seed_arr = jnp.array([seed], dtype=jnp.int32)

    kernel = functools.partial(_pos_enc_kernel,
                               dropout_p=float(dropout_p),
                               training=bool(training))

    out = pl.pallas_call(
        kernel,
        out_shape=jax.ShapeDtypeStruct((B, S, D), x.dtype),
        grid_spec=pltpu.PrefetchScalarGridSpec(
            num_scalar_prefetch=1,                               # seed lands in SMEM
            grid=(n_tiles,),
            in_specs=[
                pl.BlockSpec((B, ts, D), lambda t, seed_ref: (0, t, 0)),   # x tile
                pl.BlockSpec((ts, D), lambda t, seed_ref: (t, 0)),         # pe tile
            ],
            out_specs=pl.BlockSpec((B, ts, D), lambda t, seed_ref: (0, t, 0)),
        ),
        compiler_params=pltpu.CompilerParams(
            dimension_semantics=("parallel",),       # per-step reseed -> order-free
            vmem_limit_bytes=_vmem_limit_bytes(B, D, ts, x.dtype),
        ),
        # Operand order after the scalar-prefetch seed: x = 1, pe = 2.
        input_output_aliases=({1: 0} if donate_x else {}),
    )(seed_arr, x, pe2)
    return out


if __name__ == "__main__":
    # Module config (small, deterministic).
    d_model = 32
    seq_len = 8
    dropout_p = 0.1
    batch = 2

    pe = make_pe_table(seq_len, d_model)
    key = jax.random.PRNGKey(0)
    x = jax.random.normal(key, (batch, seq_len, d_model), dtype=jnp.float32)

    # Eval-mode forward (dropout is identity) — deterministic, checkable.
    out = positional_encoding_forward(x, pe, dropout_p=dropout_p, training=False)
    out = jax.block_until_ready(out)

    ref = x + pe[None, :seq_len, :]
    assert out.shape == (batch, seq_len, d_model)
    assert jnp.allclose(out, ref, atol=1e-6), "mismatch vs reference add"

    # Train-mode forward uses the TPU hardware PRNG (pltpu.prng_*), which has no
    # CPU/interpret lowering — only exercise it on a real TPU backend.
    if jax.devices()[0].platform == "tpu":
        out_train = positional_encoding_forward(
            x, pe, dropout_p=dropout_p, training=True, seed=1234)
        out_train = jax.block_until_ready(out_train)
        assert out_train.shape == (batch, seq_len, d_model)
        keep_frac = float(jnp.mean((out_train != 0.0).astype(jnp.float32)))
        assert 0.5 < keep_frac <= 1.0, "dropout keep fraction implausible"

    print("KERNEL_OK")
</pallas_src>

<mosaic_0001>
module attributes {stable_mosaic.version = 11 : i64} {
  func.func @_pos_enc_kernel(%arg0: i32, %arg1: memref<1xi32, #tpu.memory_space<smem>>, %arg2: memref<2x8x32xf32, #tpu.memory_space<vmem>>, %arg3: memref<8x32xf32, #tpu.memory_space<vmem>>, %arg4: memref<2x8x32xf32, #tpu.memory_space<vmem>>) attributes {dimension_semantics = [#tpu.dimension_semantics<parallel>], iteration_bounds = array<i64: 1>, scalar_prefetch = 1 : i64, scratch_operands = 0 : i64, tpu.core_type = #tpu.core_type<tc>, window_params = [{transform_indices = @transform_0, window_bounds = array<i64: 2, 8, 32>}, {transform_indices = @transform_1, window_bounds = array<i64: 8, 32>}, {transform_indices = @transform_2, window_bounds = array<i64: 2, 8, 32>}]} {
    %c0 = arith.constant 0 : index
    %c0_0 = arith.constant 0 : index
    %c0_1 = arith.constant 0 : index
    %0 = vector.load %arg2[%c0, %c0_0, %c0_1] : memref<2x8x32xf32, #tpu.memory_space<vmem>>, vector<2x8x32xf32>
    %c0_2 = arith.constant 0 : index
    %c0_3 = arith.constant 0 : index
    %1 = vector.load %arg3[%c0_2, %c0_3] : memref<8x32xf32, #tpu.memory_space<vmem>>, vector<8x32xf32>
    %2 = vector.shape_cast %1 : vector<8x32xf32> to vector<1x8x32xf32>
    %3 = vector.broadcast %2 : vector<1x8x32xf32> to vector<2x8x32xf32>
    %4 = arith.addf %0, %3 : vector<2x8x32xf32>
    %c0_4 = arith.constant 0 : index
    %c0_5 = arith.constant 0 : index
    %c0_6 = arith.constant 0 : index
    %5 = vector.load %arg4[%c0_4, %c0_5, %c0_6] : memref<2x8x32xf32, #tpu.memory_space<vmem>>, vector<2x8x32xf32>
    tpu.vector_store %arg4[%c0_4, %c0_5, %c0_6], %4 {strides = array<i32>} : memref<2x8x32xf32, #tpu.memory_space<vmem>>, vector<2x8x32xf32>,
    return
  }
  func.func @transform_0(%arg0: i32, %arg1: memref<1xi32, #tpu.memory_space<smem>>) -> (i32, i32, i32) {
    %c0_i32 = arith.constant 0 : i32
    %c0_i32_0 = arith.constant 0 : i32
    %c0_i32_1 = arith.constant 0 : i32
    return %c0_i32, %arg0, %c0_i32_0 : i32, i32, i32
  }
  func.func @transform_1(%arg0: i32, %arg1: memref<1xi32, #tpu.memory_space<smem>>) -> (i32, i32) {
    %c0_i32 = arith.constant 0 : i32
    %c0_i32_0 = arith.constant 0 : i32
    return %arg0, %c0_i32 : i32, i32
  }
  func.func @transform_2(%arg0: i32, %arg1: memref<1xi32, #tpu.memory_space<smem>>) -> (i32, i32, i32) {
    %c0_i32 = arith.constant 0 : i32
    %c0_i32_0 = arith.constant 0 : i32
    %c0_i32_1 = arith.constant 0 : i32
    return %c0_i32, %arg0, %c0_i32_0 : i32, i32, i32
  }
}

</mosaic_0001>

<llo_original>
// kernel: tpu_custom_call.1
$region0: #{tpu_custom_call.1}
  #allocation0 [shape = 'u32[]', space=smem, size = 0x4, offset = 0x4, fixed_abs, tag = 'smem constant byte address 0x4 - core index']
  #allocation1 [shape = 'u32[72,128]{1,0:T(1,128)}', space=vmem, size = 0x9000, scoped, tag = 'internal scratch']
  #allocation2 [shape = 's32[1]{0}', space=sflag, size = 0x4, scoped, tag = 'scoped memory for tpu_custom_call.1']
  #allocation3 [shape = 's32[1]{0:T(128)S(6)}', space=smem, size = 0x200, scoped, tag = 'prefetched SMEM operand 0']
  %s0 = inlined_call_operand.<no memory space> [shape: s32[1], index: 0, kind: input, shape index: {}]
  %s1 = inlined_call_operand.hbm [shape: f32[2,8,32], index: 1, kind: input, shape index: {}]
  %s2 = inlined_call_operand.hbm [shape: f32[8,32], index: 2, kind: input, shape index: {}]
  %s3 = inlined_call_operand.hbm [shape: f32[2,8,32], index: 3, kind: output, shape index: {}]
  %s4 = sld [smem:[#allocation0]]
  $region26: #{tpu_custom_call.1} parent=0
    _
  %s6 = ssub.s32 1, %s4
  %s7 = scalar_select 0, %s6, %s4
  %8 = sst [smem:[#allocation3]] %s0
  $region1: #{tpu_custom_call.1} parent=0
    #allocation4 [shape = 'u8[8192]{0}', space=vmem, size = 0x2000, scoped, tag = 'input window, operand 1, single buffered']
    #allocation5 [shape = 's32[1]{0}', space=sflag, size = 0x4, scoped, tag = 'scoped memory for tpu_custom_call.1']
    #allocation6 [shape = 's32[1]{0}', space=sflag, size = 0x4, scoped, tag = 'scoped memory for tpu_custom_call.1']
    #allocation7 [shape = 'u8[4096]{0}', space=vmem, size = 0x1000, scoped, tag = 'input window, operand 2, single buffered']
    #allocation8 [shape = 's32[1]{0}', space=sflag, size = 0x4, scoped, tag = 'scoped memory for tpu_custom_call.1']
    #allocation9 [shape = 'u8[8192]{0}', space=vmem, size = 0x2000, scoped, tag = 'output window, operand 0, single buffered']
    %9 = vsyncpa [#allocation5], 0
    %10 = vsyncpa [#allocation8], 0
    %11 = vsyncpa [#allocation6], 0
    // Predicated region
    $region2: #{tpu_custom_call.1} parent=1 // pred_check
      _
    $region3: #{tpu_custom_call.1} parent=1 // pred_check_branch
      %13 = sbr.rel (0) target = $region5
    $region4: #{tpu_custom_call.1} parent=1 // pred_region
      %15 = vsyncadd [#allocation5], 0
      %s16 = sshll.u32 %s1, 4
      %s17 = int_to_ptr.hbm [resolvable:$true] %s16
      %s18 = sshll.u32 [#allocation4], 4
      %s19 = int_to_ptr.vmem [resolvable:$true] %s18
      %24 = dma.hbm_to_vmem [thread:$0]  %s17, 256, %s19, [#allocation5], 128, 128, 8
    $region5: #{tpu_custom_call.1} parent=1 // pred_fallthru
      _
    // Predicated region
    $region6: #{tpu_custom_call.1} parent=1 // pred_check
      _
    $region7: #{tpu_custom_call.1} parent=1 // pred_check_branch
      %26 = sbr.rel (0) target = $region9
    $region8: #{tpu_custom_call.1} parent=1 // pred_region
      %28 = vsyncadd [#allocation8], 0
      %s30 = sshll.u32 %s2, 4
      %s31 = int_to_ptr.hbm [resolvable:$true] %s30
      %s32 = sshll.u32 [#allocation7], 4
      %s33 = int_to_ptr.vmem [resolvable:$true] %s32
      %35 = dma.hbm_to_vmem [thread:$0]  %s31, 128, %s33, [#allocation8]
    $region9: #{tpu_custom_call.1} parent=1 // pred_fallthru
      _
    // Predicated region
    $region10: #{tpu_custom_call.1} parent=1 // pred_check
      _
    $region11: #{tpu_custom_call.1} parent=1 // pred_check_branch
      %37 = sbr.rel (0) target = $region13
    $region12: #{tpu_custom_call.1} parent=1 // pred_region
      %39 = dma.done [#allocation5], 256
    $region13: #{tpu_custom_call.1} parent=1 // pred_fallthru
      _
    // Predicated region
    $region14: #{tpu_custom_call.1} parent=1 // pred_check
      _
    $region15: #{tpu_custom_call.1} parent=1 // pred_check_branch
      %41 = sbr.rel (0) target = $region17
    $region16: #{tpu_custom_call.1} parent=1 // pred_region
      %43 = dma.done [#allocation8], 128
    $region17: #{tpu_custom_call.1} parent=1 // pred_fallthru
      _
    %v44 = vld [vmem:[#allocation4] sm:$0xff]
    %v45 = vld [vmem:[#allocation4 + $0x8] sm:$0xff]
    %v46 = vld [vmem:[#allocation7] sm:$0xff]
    %v47 = vadd.f32 %v44, %v46
    %v48 = vadd.f32 %v45, %v46
    %vm49 = vcmask 261120
    %50 = vst.msk [vmem:[#allocation9] sm:$0xff] %vm49, %v47
    %51 = vst.msk [vmem:[#allocation9 + $0x8] sm:$0xff] %vm49, %v48
    // Predicated region
    $region18: #{tpu_custom_call.1} parent=1 // pred_check
      _
    $region19: #{tpu_custom_call.1} parent=1 // pred_check_branch
      %53 = sbr.rel (0) target = $region21
    $region20: #{tpu_custom_call.1} parent=1 // pred_region
      %55 = vsyncadd [#allocation6], 0
      %s56 = sshll.u32 [#allocation9], 4
      %s57 = int_to_ptr.vmem [resolvable:$true] %s56
      %s58 = sshll.u32 %s3, 4
      %s59 = int_to_ptr.hbm [resolvable:$true] %s58
      %64 = dma.vmem_to_hbm [thread:$0]  %s57, 256, %s59, [#allocation6], 128, 128, 8
    $region21: #{tpu_custom_call.1} parent=1 // pred_fallthru
      _
    // Predicated region
    $region22: #{tpu_custom_call.1} parent=1 // pred_check
      _
    $region23: #{tpu_custom_call.1} parent=1 // pred_check_branch
      %66 = sbr.rel (0) target = $region25
    $region24: #{tpu_custom_call.1} parent=1 // pred_region
      %68 = dma.done [#allocation6], 256
    $region25: #{tpu_custom_call.1} parent=1 // pred_fallthru
      _
    %69 = vsyncpa [#allocation5], 1
    %70 = vsyncpa [#allocation8], 1
    %71 = vsyncpa [#allocation6], 1

</llo_original>
